<compile_context>
chip_gen: v5e
topology: v5e:2x2
jax: 0.10.0
libtpu: 0.0.40
codegen_flags: <defaults>
</compile_context>

<pallas_src>
import jax
import jax.numpy as jnp
from jax.experimental import pallas as pl
from jax.experimental.pallas import tpu as pltpu


def _interp_matrix(out_size: int, in_size: int) -> jnp.ndarray:
    """Bilinear (align_corners=True) interpolation matrix of shape (out, in)."""
    if out_size == 1:
        src = jnp.zeros((1,), dtype=jnp.float32)
    else:
        src = jnp.arange(out_size, dtype=jnp.float32) * (in_size - 1) / (out_size - 1)
    lo = jnp.clip(jnp.floor(src).astype(jnp.int32), 0, in_size - 1)
    hi = jnp.clip(lo + 1, 0, in_size - 1)
    w_hi = src - lo.astype(jnp.float32)
    w_lo = 1.0 - w_hi
    rows = jnp.arange(out_size)
    W = jnp.zeros((out_size, in_size), dtype=jnp.float32)
    W = W.at[rows, lo].add(w_lo)
    W = W.at[rows, hi].add(w_hi)
    return W


def _vmem_capacity_bytes() -> int:
    try:
        return int(pltpu.get_tpu_info().vmem_capacity_bytes)
    except Exception:
        return 64 * 1024 * 1024   # conservative fallback (v7x per-TC size)


def silog_loss(pred, target, mask=None, interpolate=True):
    # TODO(synk): boolean-mask fancy indexing (dynamic element count) has no clean
    # Pallas equivalent; only mask=None is supported here.
    assert mask is None, "mask is not supported in the Pallas implementation"

    N, C, H_in, W_in = pred.shape
    H_out, W_out = target.shape[-2], target.shape[-1]

    if interpolate:
        wy = _interp_matrix(H_out, H_in)          # (H_out, H_in)
        wx = _interp_matrix(W_out, W_in)          # (W_out, W_in)
    else:
        assert (H_in, W_in) == (H_out, W_out), (
            "interpolate=False requires pred and target spatial shapes to match")
        wy = jnp.eye(H_out, dtype=jnp.float32)
        wx = jnp.eye(W_out, dtype=jnp.float32)

    # Interp weights in the input's native dtype so bf16 inputs use the bf16 MXU.
    wyt = wy.T.astype(pred.dtype)                 # (H_in, H_out)
    wxt = wx.T.astype(pred.dtype)                 # (W_in, W_out)

    NC = N * C
    # Native dtype: no wrapper upcast (keeps HBM traffic minimal for bf16).
    x = pred.reshape(NC, H_in, W_in)
    t = target.reshape(NC, H_out, W_out)

    # ---- generation-aware sizing -------------------------------------------
    vmem_cap = _vmem_capacity_bytes()
    if vmem_cap >= 96 * 1024 * 1024:
        # v5e / v6e: 128 MiB VMEM, single TensorCore.
        vmem_limit = 96 * 1024 * 1024
        block_budget = 64 * 1024 * 1024
        b_cap = 512
        num_splits = 1
    else:
        # v7x: 64 MiB VMEM per TC, 2 TensorCores -> shard the reduction.
        vmem_limit = 40 * 1024 * 1024
        block_budget = 24 * 1024 * 1024
        b_cap = 256
        num_splits = 2
        # TODO(synk): if xprof shows exposed DMA on the target stream, shrink B and
        # use pipeline_mode=pl.Buffered(3) on the target BlockSpec instead.

    # Per-slab VMEM: double-buffered input blocks + f32 kernel temporaries.
    per_slab = (2 * (H_in * W_in * x.dtype.itemsize + H_out * W_out * t.dtype.itemsize)
                + 4 * (2 * H_in * W_in + 2 * H_out * W_in + 3 * H_out * W_out))
    B = int(max(1, min(b_cap, -(-NC // num_splits), block_budget // max(per_slab, 1))))
    n_per_split = -(-NC // (num_splits * B))
    n_blocks = num_splits * n_per_split
    NC_pad = n_blocks * B
    mask_pad = NC_pad != NC
    if mask_pad:
        padn = NC_pad - NC
        # Pad with ones: log(1/1)=0, and padded rows are additionally masked
        # to exactly zero in the (rare) tail blocks inside the kernel.
        x = jnp.concatenate([x, jnp.ones((padn, H_in, W_in), x.dtype)], axis=0)
        t = jnp.concatenate([t, jnp.ones((padn, H_out, W_out), t.dtype)], axis=0)

    W_pad = -(-W_out // 128) * 128    # lane-dense accumulator width

    def kernel(x_ref, t_ref, wyt_ref, wxt_ref, acc_ref):
        c = pl.program_id(0)
        i = pl.program_id(1)

        @pl.when(i == 0)
        def _():
            acc_ref[...] = jnp.zeros_like(acc_ref)

        # ---- bilinear upsample: up[b] = wy @ x[b] @ wxt ---------------------
        x_blk = x_ref[...]                                    # (B, H_in, W_in), native
        x_t = jnp.swapaxes(x_blk, -1, -2)                     # (B, W_in, H_in)  [XLU]
        a = jnp.dot(x_t.reshape(B * W_in, H_in), wyt_ref[...],
                    preferred_element_type=jnp.float32)       # (B*W_in, H_out)
        a = a.astype(x_blk.dtype)                             # bf16 MXU path if bf16 in
        a = jnp.swapaxes(a.reshape(B, W_in, H_out), -1, -2)   # (B, H_out, W_in) [XLU]
        up = jnp.dot(a.reshape(B * H_out, W_in), wxt_ref[...],
                     preferred_element_type=jnp.float32)      # (B*H_out, W_out), f32

        t2d = t_ref[...].reshape(B * H_out, W_out).astype(jnp.float32)
        # One EUP transcendental per element.
        g = jnp.log(up / t2d)                                 # (B*H_out, W_out)

        def partial_sums(gm):
            s = jnp.sum(gm, axis=0, keepdims=True)
            ss = jnp.sum(gm * gm, axis=0, keepdims=True)
            p = jnp.concatenate([s, ss], axis=0)              # (2, W_out)
            if W_pad != W_out:
                p = jnp.concatenate(
                    [p, jnp.zeros((2, W_pad - W_out), jnp.float32)], axis=1)
            p = jnp.concatenate([p, jnp.zeros((6, W_pad), jnp.float32)], axis=0)
            return p[None]                                    # (1, 8, W_pad)

        if mask_pad:
            gb = c * n_per_split + i                          # global block index

            @pl.when((gb + 1) * B <= NC)                      # no padded slabs here
            def _():
                acc_ref[...] += partial_sums(g)

            @pl.when((gb + 1) * B > NC)                       # tail block(s) only
            def _():
                r = jax.lax.broadcasted_iota(jnp.int32, g.shape, 0)
                lim = (NC - gb * B) * H_out                   # may be <= 0
                acc_ref[...] += partial_sums(jnp.where(r < lim, g, 0.0))
        else:
            acc_ref[...] += partial_sums(g)

    acc = pl.pallas_call(
        kernel,
        out_shape=jax.ShapeDtypeStruct((num_splits, 8, W_pad), jnp.float32),
        grid_spec=pltpu.PrefetchScalarGridSpec(
            num_scalar_prefetch=0,
            grid=(num_splits, n_per_split),
            in_specs=[
                pl.BlockSpec((B, H_in, W_in),
                             lambda c, i: (c * n_per_split + i, 0, 0)),
                pl.BlockSpec((B, H_out, W_out),
                             lambda c, i: (c * n_per_split + i, 0, 0)),
                pl.BlockSpec((H_in, H_out), lambda c, i: (0, 0)),
                pl.BlockSpec((W_in, W_out), lambda c, i: (0, 0)),
            ],
            out_specs=pl.BlockSpec((1, 8, W_pad), lambda c, i: (c, 0, 0)),
        ),
        compiler_params=pltpu.CompilerParams(
            dimension_semantics=("parallel", "arbitrary"),
            vmem_limit_bytes=vmem_limit),
    )(x, t, wyt, wxt)

    # Epilogue: collapse lanes / cores and combine into the SILog scalar.
    n = jnp.float32(NC * H_out * W_out)
    total = jnp.sum(acc[:, 0, :])
    total_sq = jnp.sum(acc[:, 1, :])
    mean = total / n
    var = (total_sq - n * mean * mean) / (n - 1.0)   # torch.var default: unbiased
    var = jnp.maximum(var, 0.0)  # guard one-pass variance against f32 cancellation
    dg = var + 0.15 * mean * mean
    return 10.0 * jnp.sqrt(dg)


def _ref_silog(pred, target):
    """Pure-JAX reference matching PyTorch semantics (mask=None, interpolate=True)."""
    N, C, Hi, Wi = pred.shape
    Ho, Wo = target.shape[-2:]
    ys = jnp.arange(Ho, dtype=jnp.float32) * (Hi - 1) / (Ho - 1)
    xs = jnp.arange(Wo, dtype=jnp.float32) * (Wi - 1) / (Wo - 1)
    y0 = jnp.clip(jnp.floor(ys).astype(jnp.int32), 0, Hi - 1)
    y1 = jnp.clip(y0 + 1, 0, Hi - 1)
    x0 = jnp.clip(jnp.floor(xs).astype(jnp.int32), 0, Wi - 1)
    x1 = jnp.clip(x0 + 1, 0, Wi - 1)
    wy = (ys - y0.astype(jnp.float32))[None, None, :, None]
    wx = (xs - x0.astype(jnp.float32))
    top = pred[:, :, y0][:, :, :, x0] * (1 - wx) + pred[:, :, y0][:, :, :, x1] * wx
    bot = pred[:, :, y1][:, :, :, x0] * (1 - wx) + pred[:, :, y1][:, :, :, x1] * wx
    up = top * (1 - wy) + bot * wy
    g = jnp.log(up) - jnp.log(target)
    n = g.size
    mean = jnp.mean(g)
    var = jnp.sum((g - mean) ** 2) / (n - 1)
    return 10.0 * jnp.sqrt(var + 0.15 * mean ** 2)


if __name__ == "__main__":
    key = jax.random.PRNGKey(0)
    k1, k2 = jax.random.split(key)
    # Depth predictions / targets must be positive (torch.log).
    pred = jax.random.uniform(k1, (2, 4, 8, 8), jnp.float32, minval=0.1, maxval=10.0)
    target = jax.random.uniform(k2, (2, 4, 16, 16), jnp.float32, minval=0.1, maxval=10.0)

    loss = jax.block_until_ready(silog_loss(pred, target))
    ref = jax.block_until_ready(_ref_silog(pred, target))
    assert jnp.allclose(loss, ref, rtol=1e-4, atol=1e-4), (loss, ref)
    print("KERNEL_OK")
</pallas_src>

<mosaic_0001>
module attributes {stable_mosaic.version = 11 : i64} {
  func.func @kernel(%arg0: i32, %arg1: i32, %arg2: memref<4x8x8xf32, #tpu.memory_space<vmem>>, %arg3: memref<4x16x16xf32, #tpu.memory_space<vmem>>, %arg4: memref<8x16xf32, #tpu.memory_space<vmem>>, %arg5: memref<8x16xf32, #tpu.memory_space<vmem>>, %arg6: memref<1x8x128xf32, #tpu.memory_space<vmem>>) attributes {dimension_semantics = [#tpu.dimension_semantics<parallel>, #tpu.dimension_semantics<arbitrary>], iteration_bounds = array<i64: 2, 1>, scalar_prefetch = 0 : i64, scratch_operands = 0 : i64, tpu.core_type = #tpu.core_type<tc>, window_params = [{transform_indices = @transform_0, window_bounds = array<i64: 4, 8, 8>}, {transform_indices = @transform_1, window_bounds = array<i64: 4, 16, 16>}, {pipeline_mode = #tpu.pipeline_mode<synchronous>, transform_indices = @transform_2, window_bounds = array<i64: 8, 16>}, {pipeline_mode = #tpu.pipeline_mode<synchronous>, transform_indices = @transform_3, window_bounds = array<i64: 8, 16>}, {transform_indices = @transform_4, window_bounds = array<i64: 1, 8, 128>}]} {
    %c0_i32 = arith.constant 0 : i32
    %0 = arith.cmpi eq, %arg1, %c0_i32 : i32
    %1 = arith.extui %0 : i1 to i32
    %c0_i32_0 = arith.constant 0 : i32
    %2 = arith.cmpi ne, %1, %c0_i32_0 : i32
    scf.if %2 {
      %cst_21 = arith.constant 0.000000e+00 : f32
      %31 = vector.broadcast %cst_21 : f32 to vector<1x8x128xf32>
      %c0_22 = arith.constant 0 : index
      %c0_23 = arith.constant 0 : index
      %c0_24 = arith.constant 0 : index
      %32 = vector.load %arg6[%c0_22, %c0_23, %c0_24] : memref<1x8x128xf32, #tpu.memory_space<vmem>>, vector<1x8x128xf32>
      tpu.vector_store %arg6[%c0_22, %c0_23, %c0_24], %31 {strides = array<i32>} : memref<1x8x128xf32, #tpu.memory_space<vmem>>, vector<1x8x128xf32>,
    } else {
    }
    %c0 = arith.constant 0 : index
    %c0_1 = arith.constant 0 : index
    %c0_2 = arith.constant 0 : index
    %3 = vector.load %arg2[%c0, %c0_1, %c0_2] : memref<4x8x8xf32, #tpu.memory_space<vmem>>, vector<4x8x8xf32>
    %4 = tpu.transpose %3, [0, 2, 1] : vector<4x8x8xf32> -> vector<4x8x8xf32>
    %5 = vector.shape_cast %4 : vector<4x8x8xf32> to vector<32x8xf32>
    %c0_3 = arith.constant 0 : index
    %c0_4 = arith.constant 0 : index
    %6 = vector.load %arg4[%c0_3, %c0_4] : memref<8x16xf32, #tpu.memory_space<vmem>>, vector<8x16xf32>
    %cst = arith.constant dense<0.000000e+00> : vector<32x16xf32>
    %7 = tpu.matmul %5, %6, %cst {dimension_numbers = #tpu.dot_dimension_numbers<[1], [0], [0], [1], [0, 0, 1, 1], [], []>} : vector<32x8xf32>, vector<8x16xf32>, vector<32x16xf32> -> vector<32x16xf32>
    %8 = vector.shape_cast %7 : vector<32x16xf32> to vector<4x8x16xf32>
    %9 = tpu.transpose %8, [0, 2, 1] : vector<4x8x16xf32> -> vector<4x16x8xf32>
    %10 = vector.shape_cast %9 : vector<4x16x8xf32> to vector<64x8xf32>
    %c0_5 = arith.constant 0 : index
    %c0_6 = arith.constant 0 : index
    %11 = vector.load %arg5[%c0_5, %c0_6] : memref<8x16xf32, #tpu.memory_space<vmem>>, vector<8x16xf32>
    %cst_7 = arith.constant dense<0.000000e+00> : vector<64x16xf32>
    %12 = tpu.matmul %10, %11, %cst_7 {dimension_numbers = #tpu.dot_dimension_numbers<[1], [0], [0], [1], [0, 0, 1, 1], [], []>} : vector<64x8xf32>, vector<8x16xf32>, vector<64x16xf32> -> vector<64x16xf32>
    %c0_8 = arith.constant 0 : index
    %c0_9 = arith.constant 0 : index
    %c0_10 = arith.constant 0 : index
    %13 = vector.load %arg3[%c0_8, %c0_9, %c0_10] : memref<4x16x16xf32, #tpu.memory_space<vmem>>, vector<4x16x16xf32>
    %14 = vector.shape_cast %13 : vector<4x16x16xf32> to vector<64x16xf32>
    %15 = arith.divf %12, %14 : vector<64x16xf32>
    %16 = math.log %15 : vector<64x16xf32>
    %c0_11 = arith.constant 0 : index
    %c0_12 = arith.constant 0 : index
    %c0_13 = arith.constant 0 : index
    %17 = vector.load %arg6[%c0_11, %c0_12, %c0_13] : memref<1x8x128xf32, #tpu.memory_space<vmem>>, vector<1x8x128xf32>
    %cst_14 = arith.constant dense<0.000000e+00> : vector<16xf32>
    %18 = vector.multi_reduction <add>, %16, %cst_14 [0] : vector<64x16xf32> to vector<16xf32>
    %19 = vector.shape_cast %18 : vector<16xf32> to vector<1x16xf32>
    %20 = arith.mulf %16, %16 : vector<64x16xf32>
    %cst_15 = arith.constant dense<0.000000e+00> : vector<16xf32>
    %21 = vector.multi_reduction <add>, %20, %cst_15 [0] : vector<64x16xf32> to vector<16xf32>
    %22 = vector.shape_cast %21 : vector<16xf32> to vector<1x16xf32>
    %23 = tpu.concatenate %19, %22 in 0 : vector<1x16xf32>, vector<1x16xf32> -> vector<2x16xf32>
    %cst_16 = arith.constant 0.000000e+00 : f32
    %24 = vector.broadcast %cst_16 : f32 to vector<2x112xf32>
    %25 = tpu.concatenate %23, %24 in 1 : vector<2x16xf32>, vector<2x112xf32> -> vector<2x128xf32>
    %cst_17 = arith.constant 0.000000e+00 : f32
    %26 = vector.broadcast %cst_17 : f32 to vector<6x128xf32>
    %27 = tpu.concatenate %25, %26 in 0 : vector<2x128xf32>, vector<6x128xf32> -> vector<8x128xf32>
    %28 = vector.shape_cast %27 : vector<8x128xf32> to vector<1x8x128xf32>
    %29 = arith.addf %17, %28 : vector<1x8x128xf32>
    %c0_18 = arith.constant 0 : index
    %c0_19 = arith.constant 0 : index
    %c0_20 = arith.constant 0 : index
    %30 = vector.load %arg6[%c0_18, %c0_19, %c0_20] : memref<1x8x128xf32, #tpu.memory_space<vmem>>, vector<1x8x128xf32>
    tpu.vector_store %arg6[%c0_18, %c0_19, %c0_20], %29 {strides = array<i32>} : memref<1x8x128xf32, #tpu.memory_space<vmem>>, vector<1x8x128xf32>,
    return
  }
  func.func @transform_0(%arg0: i32, %arg1: i32) -> (i32, i32, i32) {
    %c1_i32 = arith.constant 1 : i32
    %0 = arith.muli %arg0, %c1_i32 : i32
    %1 = arith.addi %0, %arg1 : i32
    %c0_i32 = arith.constant 0 : i32
    %c0_i32_0 = arith.constant 0 : i32
    %c0_i32_1 = arith.constant 0 : i32
    return %1, %c0_i32, %c0_i32_0 : i32, i32, i32
  }
  func.func @transform_1(%arg0: i32, %arg1: i32) -> (i32, i32, i32) {
    %c1_i32 = arith.constant 1 : i32
    %0 = arith.muli %arg0, %c1_i32 : i32
    %1 = arith.addi %0, %arg1 : i32
    %c0_i32 = arith.constant 0 : i32
    %c0_i32_0 = arith.constant 0 : i32
    %c0_i32_1 = arith.constant 0 : i32
    return %1, %c0_i32, %c0_i32_0 : i32, i32, i32
  }
  func.func @transform_2(%arg0: i32, %arg1: i32) -> (i32, i32) {
    %c0_i32 = arith.constant 0 : i32
    %c0_i32_0 = arith.constant 0 : i32
    %c0_i32_1 = arith.constant 0 : i32
    return %c0_i32, %c0_i32_0 : i32, i32
  }
  func.func @transform_3(%arg0: i32, %arg1: i32) -> (i32, i32) {
    %c0_i32 = arith.constant 0 : i32
    %c0_i32_0 = arith.constant 0 : i32
    %c0_i32_1 = arith.constant 0 : i32
    return %c0_i32, %c0_i32_0 : i32, i32
  }
  func.func @transform_4(%arg0: i32, %arg1: i32) -> (i32, i32, i32) {
    %c0_i32 = arith.constant 0 : i32
    %c0_i32_0 = arith.constant 0 : i32
    %c0_i32_1 = arith.constant 0 : i32
    return %arg0, %c0_i32, %c0_i32_0 : i32, i32, i32
  }
}

</mosaic_0001>

<llo_original>
// kernel: tpu_custom_call.1
$region0: #{tpu_custom_call.1}
  #allocation0 [shape = 'u32[]', space=smem, size = 0x4, offset = 0x4, fixed_abs, tag = 'smem constant byte address 0x4 - core index']
  #allocation1 [shape = 'u32[72,128]{1,0:T(1,128)}', space=vmem, size = 0x9000, scoped, tag = 'internal scratch']
  %s0 = inlined_call_operand.hbm [shape: f32[8,8,8], index: 0, kind: input, shape index: {}]
  %s1 = inlined_call_operand.hbm [shape: f32[8,16,16], index: 1, kind: input, shape index: {}]
  %s2 = inlined_call_operand.hbm [shape: f32[8,16], index: 2, kind: input, shape index: {}]
  %s3 = inlined_call_operand.hbm [shape: f32[8,16], index: 3, kind: input, shape index: {}]
  %s4 = inlined_call_operand.hbm [shape: f32[2,8,128], index: 4, kind: output, shape index: {}]
  %s5 = sld [smem:[#allocation0]]
  $region69: #{tpu_custom_call.1} parent=0
    _
  %s7 = ssub.s32 1, %s5
  %s8 = scalar_select 0, %s7, %s5
  $region1: #{tpu_custom_call.1} parent=0
    #allocation2 [shape = 'u8[32768]{0}', space=vmem, size = 0x8000, scoped, tag = 'input window, operand 0']
    #allocation3 [shape = 's32[2]{0}', space=sflag, size = 0x8, scoped, tag = 'scoped memory for tpu_custom_call.1']
    #allocation4 [shape = 's32[2]{0}', space=sflag, size = 0x8, scoped, tag = 'scoped memory for tpu_custom_call.1']
    #allocation5 [shape = 'u8[65536]{0}', space=vmem, size = 0x10000, scoped, tag = 'input window, operand 1']
    #allocation6 [shape = 's32[2]{0}', space=sflag, size = 0x8, scoped, tag = 'scoped memory for tpu_custom_call.1']
    #allocation7 [shape = 'u8[4096]{0}', space=vmem, size = 0x1000, scoped, tag = 'input window, operand 2, single buffered']
    #allocation8 [shape = 'u8[4096]{0}', space=vmem, size = 0x1000, scoped, tag = 'input window, operand 3, single buffered']
    #allocation9 [shape = 's32[1]{0}', space=sflag, size = 0x4, scoped, tag = 'scoped memory for tpu_custom_call.1']
    #allocation10 [shape = 'u8[8192]{0}', space=vmem, size = 0x2000, scoped, tag = 'output window, operand 0']
    %9 = vsyncpa [#allocation3], 0
    %s10 = scalar_lea.sflag [#allocation3], 1
    %11 = vsyncpa %s10, 0
    %12 = vsyncpa [#allocation6], 0
    %s13 = scalar_lea.sflag [#allocation6], 1
    %14 = vsyncpa %s13, 0
    %15 = vsyncpa [#allocation9], 0
    %16 = vsyncpa [#allocation4], 0
    %s17 = scalar_lea.sflag [#allocation4], 1
    %18 = vsyncpa %s17, 0
    loop: start=0, step=1, limit=4
    $region2: #{tpu_custom_call.1} parent=1 // loop_pre_header
      _
    $region3: #{tpu_custom_call.1} parent=1 // loop_header
      %s20 = sphi 0, %s24
      %p21 = scmp.ge.s32.totalorder %s20, 4
      %s27 = sphi 0, %s39
      %s28 = sphi 0, %s35
      %s29 = sphi 0, %s27
      %s30 = sphi 0, %s28
      %s31 = sphi 0, %s29
      %s32 = sphi 0, %s30
      %s44 = sphi 0, %s46
      %s47 = sphi 0, %s44
      %s48 = sphi 0, %s47
      %s64 = sphi 0, %s48
      %s72 = sphi 0, %s74
      %s75 = sphi 0, %s72
      %s76 = sphi 0, %s75
      %s92 = sphi 0, %s76
      %s96 = sphi 0, %s96
      %s98 = sphi 0, %s96
      %s99 = sphi 0, %s98
      %s113 = sphi 0, %s99
      %s117 = sphi 0, %s117
      %s119 = sphi 0, %s117
      %s120 = sphi 0, %s119
      %s134 = sphi 0, %s120
      %s140 = sphi 0, %s142
      %s143 = sphi 0, %s140
      %s144 = sphi 0, %s143
      %s160 = sphi 0, %s144
    $region4: #{tpu_custom_call.1} parent=1 // loop_header_branch
      %23 = sbr.rel (%p21) target = $region8
    $region5: #{tpu_custom_call.1} parent=1 // loop_body
      %s25 = ssub.s32 %s20, 1
      %s26 = ssub.s32 %s20, 2
      %s33 = sadd.s32 1, %s28
      %p34 = scmp.ge.s32.totalorder %s33, 1
      %s35 = scalar_select %p34, 0, %s33
      %s36 = sadd.s32 1, %s27
      %s37 = scalar_select %p34, %s36, %s27
      %p38 = scmp.ge.s32.totalorder %s37, 2
      %s39 = scalar_select %p38, 0, %s37
      %s40 = sadd.s32 %s27, %s28
      %s41 = sadd.s32 %s39, %s35
      %s42 = ssub.s32 %s40, %s41
      %p43 = scmp.eq.s32.totalorder %s42, 0
      %s45 = sadd.s32 %s44, 1
      %s46 = scalar_select %p43, %s44, %s45
      %p49 = pneg %p43
      %p50 = scmp.eq.s32.totalorder %s20, 1
      %p51 = por %p49, %p50
      %p52 = scmp.ne.s32.totalorder %s44, %s47
      %p53 = scmp.eq.s32.totalorder %s20, 0
      %p54 = por %p52, %p53
      %p55 = scmp.ne.s32.totalorder %s44, %s47
      %p56 = scmp.eq.s32.totalorder %s25, 1
      %p57 = por %p55, %p56
      %p58 = scmp.ne.s32.totalorder %s47, %s48
      %p59 = scmp.eq.s32.totalorder %s25, 0
      %p60 = por %p58, %p59
      %p61 = scmp.ne.s32.totalorder %s47, %s48
      %p62 = scmp.eq.s32.totalorder %s26, 1
      %p63 = por %p61, %p62
      %p65 = scmp.ne.s32.totalorder %s48, %s64
      %p66 = scmp.eq.s32.totalorder %s26, 0
      %p67 = por %p65, %p66
      %s68 = sadd.s32 %s27, %s28
      %s69 = sadd.s32 %s39, %s35
      %s70 = ssub.s32 %s68, %s69
      %p71 = scmp.eq.s32.totalorder %s70, 0
      %s73 = sadd.s32 %s72, 1
      %s74 = scalar_select %p71, %s72, %s73
      %p77 = pneg %p71
      %p78 = scmp.eq.s32.totalorder %s20, 1
      %p79 = por %p77, %p78
      %p80 = scmp.ne.s32.totalorder %s72, %s75
      %p81 = scmp.eq.s32.totalorder %s20, 0
      %p82 = por %p80, %p81
      %p83 = scmp.ne.s32.totalorder %s72, %s75
      %p84 = scmp.eq.s32.totalorder %s25, 1
      %p85 = por %p83, %p84
      %p86 = scmp.ne.s32.totalorder %s75, %s76
      %p87 = scmp.eq.s32.totalorder %s25, 0
      %p88 = por %p86, %p87
      %p89 = scmp.ne.s32.totalorder %s75, %s76
      %p90 = scmp.eq.s32.totalorder %s26, 1
      %p91 = por %p89, %p90
      %p93 = scmp.ne.s32.totalorder %s76, %s92
      %p94 = scmp.eq.s32.totalorder %s26, 0
      %p95 = por %p93, %p94
      %s97 = sadd.s32 %s96, 1
      %p100 = scmp.eq.s32.totalorder %s20, 1
      %p101 = scmp.ne.s32.totalorder %s96, %s98
      %p102 = scmp.eq.s32.totalorder %s20, 0
      %p103 = por %p101, %p102
      %p104 = scmp.ne.s32.totalorder %s96, %s98
      %p105 = scmp.eq.s32.totalorder %s25, 1
      %p106 = por %p104, %p105
      %p107 = scmp.ne.s32.totalorder %s98, %s99
      %p108 = scmp.eq.s32.totalorder %s25, 0
      %p109 = por %p107, %p108
      %p110 = scmp.ne.s32.totalorder %s98, %s99
      %p111 = scmp.eq.s32.totalorder %s26, 1
      %p112 = por %p110, %p111
      %p114 = scmp.ne.s32.totalorder %s99, %s113
      %p115 = scmp.eq.s32.totalorder %s26, 0
      %p116 = por %p114, %p115
      %s118 = sadd.s32 %s117, 1
      %p121 = scmp.eq.s32.totalorder %s20, 1
      %p122 = scmp.ne.s32.totalorder %s117, %s119
      %p123 = scmp.eq.s32.totalorder %s20, 0
      %p124 = por %p122, %p123
      %p125 = scmp.ne.s32.totalorder %s117, %s119
      %p126 = scmp.eq.s32.totalorder %s25, 1
      %p127 = por %p125, %p126
      %p128 = scmp.ne.s32.totalorder %s119, %s120
      %p129 = scmp.eq.s32.totalorder %s25, 0
      %p130 = por %p128, %p129
      %p131 = scmp.ne.s32.totalorder %s119, %s120
      %p132 = scmp.eq.s32.totalorder %s26, 1
      %p133 = por %p131, %p132
      %p135 = scmp.ne.s32.totalorder %s120, %s134
      %p136 = scmp.eq.s32.totalorder %s26, 0
      %p137 = por %p135, %p136
      %s138 = ssub.s32 %s27, %s39
      %p139 = scmp.eq.s32.totalorder %s138, 0
      %s141 = sadd.s32 %s140, 1
      %s142 = scalar_select %p139, %s140, %s141
      %p145 = pneg %p139
      %p146 = scmp.eq.s32.totalorder %s20, 1
      %p147 = por %p145, %p146
      %p148 = scmp.ne.s32.totalorder %s140, %s143
      %p149 = scmp.eq.s32.totalorder %s20, 0
      %p150 = por %p148, %p149
      %p151 = scmp.ne.s32.totalorder %s140, %s143
      %p152 = scmp.eq.s32.totalorder %s25, 1
      %p153 = por %p151, %p152
      %p154 = scmp.ne.s32.totalorder %s143, %s144
      %p155 = scmp.eq.s32.totalorder %s25, 0
      %p156 = por %p154, %p155
      %p157 = scmp.ne.s32.totalorder %s143, %s144
      %p158 = scmp.eq.s32.totalorder %s26, 1
      %p159 = por %p157, %p158
      %p161 = scmp.ne.s32.totalorder %s144, %s160
      %p162 = scmp.eq.s32.totalorder %s26, 0
      %p163 = por %p161, %p162
      %p164 = scmp.le.s32.totalorder 1, %s20
      %p165 = scmp.lt.s32.totalorder %s20, 3
      %p166 = pnand %p164, %p165
      %p167 = pneg %p166
      // Predicated region
      $region9: #{tpu_custom_call.1} parent=5 // pred_check
        _
      $region10: #{tpu_custom_call.1} parent=5 // pred_check_branch
        %169 = sbr.rel (%p166) target = $region12
      $region11: #{tpu_custom_call.1} parent=5 // pred_region
        %s170 = ssub.s32 %s20, 1
        // Predicated region
        $region13: #{tpu_custom_call.1} parent=11 // pred_check
          %p171 = pneg %p109
        $region14: #{tpu_custom_call.1} parent=11 // pred_check_branch
          %173 = sbr.rel (%p171) target = $region16
        $region15: #{tpu_custom_call.1} parent=11 // pred_region
          %175 = vsyncadd [#allocation6], 0
          %s177 = sshll.u32 %s2, 4
          %s178 = int_to_ptr.hbm [resolvable:$true] %s177
          %s179 = sshll.u32 [#allocation7], 4
          %s180 = int_to_ptr.vmem [resolvable:$true] %s179
          %182 = dma.hbm_to_vmem [thread:$0]  %s178, 128, %s180, [#allocation6]
        $region16: #{tpu_custom_call.1} parent=11 // pred_fallthru
          _
        // Predicated region
        $region17: #{tpu_custom_call.1} parent=11 // pred_check
          %p183 = pneg %p130
        $region18: #{tpu_custom_call.1} parent=11 // pred_check_branch
          %185 = sbr.rel (%p183) target = $region20
        $region19: #{tpu_custom_call.1} parent=11 // pred_region
          %187 = vsyncadd [#allocation9], 0
          %s189 = sshll.u32 %s3, 4
          %s190 = int_to_ptr.hbm [resolvable:$true] %s189
          %s191 = sshll.u32 [#allocation8], 4
          %s192 = int_to_ptr.vmem [resolvable:$true] %s191
          %194 = dma.hbm_to_vmem [thread:$0]  %s190, 128, %s192, [#allocation9]
        $region20: #{tpu_custom_call.1} parent=11 // pred_fallthru
          _
      $region12: #{tpu_custom_call.1} parent=5 // pred_fallthru
        _
      %p195 = scmp.lt.s32.totalorder %s20, 2
      // Predicated region
      $region21: #{tpu_custom_call.1} parent=5 // pred_check
        %p196 = pneg %p195
      $region22: #{tpu_custom_call.1} parent=5 // pred_check_branch
        %198 = sbr.rel (%p196) target = $region24
      $region23: #{tpu_custom_call.1} parent=5 // pred_region
        // Predicated region
        $region25: #{tpu_custom_call.1} parent=23 // pred_check
          %p199 = pneg %p54
        $region26: #{tpu_custom_call.1} parent=23 // pred_check_branch
          %201 = sbr.rel (%p199) target = $region28
        $region27: #{tpu_custom_call.1} parent=23 // pred_region
          %s202 = sand.u32 %s44, 1
          %s203 = scalar_lea.sflag [#allocation3], %s202
          %s204 = sand.u32 %s44, 1
          %s205 = smul.addr %s204, 32
          %s206 = scalar_lea.vmem [#allocation2], %s205
          %s207 = sadd.s32 %s27, %s28
          %s208 = smul.u32 4, %s207
          %210 = vsyncadd %s203, 0
          %s211 = smul.addr %s208, 8
          %s212 = scalar_lea.hbm %s0, %s211
          %s213 = sshll.u32 %s212, 4
          %s214 = int_to_ptr.hbm [resolvable:$true] %s213
          %s215 = sshll.u32 %s206, 4
          %s216 = int_to_ptr.vmem [resolvable:$true] %s215
          %221 = dma.hbm_to_vmem [thread:$0]  %s214, 512, %s216, %s203, 128, 128, 8
        $region28: #{tpu_custom_call.1} parent=23 // pred_fallthru
          _
        // Predicated region
        $region29: #{tpu_custom_call.1} parent=23 // pred_check
          %p222 = pneg %p82
        $region30: #{tpu_custom_call.1} parent=23 // pred_check_branch
          %224 = sbr.rel (%p222) target = $region32
        $region31: #{tpu_custom_call.1} parent=23 // pred_region
          %s225 = sand.u32 %s20, 1
          %s226 = scalar_lea.sflag [#allocation6], %s225
          %s227 = sand.u32 %s72, 1
          %s228 = smul.addr %s227, 64
          %s229 = scalar_lea.vmem [#allocation5], %s228
          %s230 = sadd.s32 %s27, %s28
          %s231 = smul.u32 4, %s230
          %233 = vsyncadd %s226, 0
          %s234 = smul.addr %s231, 2
          %s235 = smul.addr %s234, 8
          %s236 = scalar_lea.hbm %s1, %s235
          %s237 = sshll.u32 %s236, 4
          %s238 = int_to_ptr.hbm [resolvable:$true] %s237
          %s239 = sshll.u32 %s229, 4
          %s240 = int_to_ptr.vmem [resolvable:$true] %s239
          %245 = dma.hbm_to_vmem [thread:$0]  %s238, 1024, %s240, %s226, 128, 128, 8
        $region32: #{tpu_custom_call.1} parent=23 // pred_fallthru
          _
      $region24: #{tpu_custom_call.1} parent=5 // pred_fallthru
        _
      %p246 = scmp.le.s32.totalorder 1, %s20
      %p247 = scmp.lt.s32.totalorder %s20, 3
      %p248 = pnand %p246, %p247
      %p249 = pneg %p248
      // Predicated region
      $region33: #{tpu_custom_call.1} parent=5 // pred_check
        _
      $region34: #{tpu_custom_call.1} parent=5 // pred_check_branch
        %251 = sbr.rel (%p248) target = $region36
      $region35: #{tpu_custom_call.1} parent=5 // pred_region
        %s252 = ssub.s32 %s20, 1
        %s253 = sand.u32 %s47, 1
        %s254 = scalar_lea.sflag [#allocation3], %s253
        %s255 = sand.u32 %s47, 1
        %s256 = smul.addr %s255, 32
        %s257 = scalar_lea.vmem [#allocation2], %s256
        // Predicated region
        $region37: #{tpu_custom_call.1} parent=35 // pred_check
          %p258 = pneg %p60
        $region38: #{tpu_custom_call.1} parent=35 // pred_check_branch
          %260 = sbr.rel (%p258) target = $region40
        $region39: #{tpu_custom_call.1} parent=35 // pred_region
          %262 = dma.done %s254, 512
        $region40: #{tpu_custom_call.1} parent=35 // pred_fallthru
          _
        %s263 = sand.u32 %s25, 1
        %s264 = scalar_lea.sflag [#allocation6], %s263
        %s265 = sand.u32 %s75, 1
        %s266 = smul.addr %s265, 64
        %s267 = scalar_lea.vmem [#allocation5], %s266
        // Predicated region
        $region41: #{tpu_custom_call.1} parent=35 // pred_check
          %p268 = pneg %p88
        $region42: #{tpu_custom_call.1} parent=35 // pred_check_branch
          %270 = sbr.rel (%p268) target = $region44
        $region43: #{tpu_custom_call.1} parent=35 // pred_region
          %272 = dma.done %s264, 1024
        $region44: #{tpu_custom_call.1} parent=35 // pred_fallthru
          _
        // Predicated region
        $region45: #{tpu_custom_call.1} parent=35 // pred_check
          %p273 = pneg %p109
        $region46: #{tpu_custom_call.1} parent=35 // pred_check_branch
          %275 = sbr.rel (%p273) target = $region48
        $region47: #{tpu_custom_call.1} parent=35 // pred_region
          %277 = dma.done [#allocation6], 128
        $region48: #{tpu_custom_call.1} parent=35 // pred_fallthru
          _
        // Predicated region
        $region49: #{tpu_custom_call.1} parent=35 // pred_check
          %p278 = pneg %p130
        $region50: #{tpu_custom_call.1} parent=35 // pred_check_branch
          %280 = sbr.rel (%p278) target = $region52
        $region51: #{tpu_custom_call.1} parent=35 // pred_region
          %282 = dma.done [#allocation9], 128
        $region52: #{tpu_custom_call.1} parent=35 // pred_fallthru
          _
        %s283 = sand.u32 %s47, 1
        %s284 = scalar_lea.sflag [#allocation3], %s283
        %s285 = sand.u32 %s47, 1
        %s286 = smul.addr %s285, 32
        %s287 = scalar_lea.vmem [#allocation2], %s286
        %p288 = pneg %p60
        %p289 = pneg %p57
        %s290 = sand.u32 %s25, 1
        %s291 = scalar_lea.sflag [#allocation6], %s290
        %s292 = sand.u32 %s75, 1
        %s293 = smul.addr %s292, 64
        %s294 = scalar_lea.vmem [#allocation5], %s293
        %p295 = pneg %p88
        %p296 = pneg %p85
        %p297 = pneg %p109
        %p298 = pneg %p106
        %p299 = pneg %p130
        %p300 = pneg %p127
        %p301 = pneg %p156
        %p302 = pneg %p153
        %s303 = sand.u32 %s143, 1
        %s304 = scalar_lea.sflag [#allocation4], %s303
        %s305 = sand.u32 %s143, 1
        %s306 = smul.addr %s305, 8
        %s307 = scalar_lea.vmem [#allocation10], %s306
        %s308 = sadd.s32 %s29, %s30
        %s309 = smul.u32 4, %s308
        %s310 = sadd.s32 %s29, %s30
        %s311 = smul.u32 4, %s310
        %p312 = scmp.eq.s32.totalorder %s30, 0
        // Predicated region
        $region53: #{tpu_custom_call.1} parent=35 // pred_check
          %p313 = pneg %p312
        $region54: #{tpu_custom_call.1} parent=35 // pred_check_branch
          %315 = sbr.rel (%p313) target = $region56
        $region55: #{tpu_custom_call.1} parent=35 // pred_region
          %316 = vst [vmem:[%s307] sm:$0xff] 0.0
        $region56: #{tpu_custom_call.1} parent=35 // pred_fallthru
          _
        %v317 = vld [vmem:[%s257] sm:$0xff]
        %v318 = vld [vmem:[%s257 + $0x8] sm:$0xff]
        %v319 = vld [vmem:[%s257 + $0x10] sm:$0xff]
        %v320 = vld [vmem:[%s257 + $0x18] sm:$0xff]
        %321 = vxpose.xlu0.b32.start [1/16] %v317, 128
        %322 = vxpose.xlu0.b32.cont [2/16] 0.0, 128
        %323 = vxpose.xlu0.b32.cont [3/16] 0.0, 128
        %324 = vxpose.xlu0.b32.cont [4/16] 0.0, 128
        %325 = vxpose.xlu0.b32.cont [5/16] 0.0, 128
        %326 = vxpose.xlu0.b32.cont [6/16] 0.0, 128
        %327 = vxpose.xlu0.b32.cont [7/16] 0.0, 128
        %328 = vxpose.xlu0.b32.cont [8/16] 0.0, 128
        %329 = vxpose.xlu0.b32.cont [9/16] 0.0, 128
        %330 = vxpose.xlu0.b32.cont [10/16] 0.0, 128
        %331 = vxpose.xlu0.b32.cont [11/16] 0.0, 128
        %332 = vxpose.xlu0.b32.cont [12/16] 0.0, 128
        %333 = vxpose.xlu0.b32.cont [13/16] 0.0, 128
        %334 = vxpose.xlu0.b32.cont [14/16] 0.0, 128
        %335 = vxpose.xlu0.b32.cont [15/16] 0.0, 128
        %336 = vxpose.xlu0.b32.end [16/16] 0.0, 128
        %v337 = vpop.trf.xlu0
        %v338 = vpop.trf.xlu0
        %v339 = vpop.trf.xlu0
        %v340 = vpop.trf.xlu0
        %v341 = vpop.trf.xlu0
        %v342 = vpop.trf.xlu0
        %v343 = vpop.trf.xlu0
        %v344 = vpop.trf.xlu0
        %v345 = vpop.trf.xlu0
        %v346 = vpop.trf.xlu0
        %v347 = vpop.trf.xlu0
        %v348 = vpop.trf.xlu0
        %v349 = vpop.trf.xlu0
        %v350 = vpop.trf.xlu0
        %v351 = vpop.trf.xlu0
        %v352 = vpop.trf.xlu0
        %353 = vxpose.xlu0.b32.start [1/16] %v318, 128
        %354 = vxpose.xlu0.b32.cont [2/16] 0.0, 128
        %355 = vxpose.xlu0.b32.cont [3/16] 0.0, 128
        %356 = vxpose.xlu0.b32.cont [4/16] 0.0, 128
        %357 = vxpose.xlu0.b32.cont [5/16] 0.0, 128
        %358 = vxpose.xlu0.b32.cont [6/16] 0.0, 128
        %359 = vxpose.xlu0.b32.cont [7/16] 0.0, 128
        %360 = vxpose.xlu0.b32.cont [8/16] 0.0, 128
        %361 = vxpose.xlu0.b32.cont [9/16] 0.0, 128
        %362 = vxpose.xlu0.b32.cont [10/16] 0.0, 128
        %363 = vxpose.xlu0.b32.cont [11/16] 0.0, 128
        %364 = vxpose.xlu0.b32.cont [12/16] 0.0, 128
        %365 = vxpose.xlu0.b32.cont [13/16] 0.0, 128
        %366 = vxpose.xlu0.b32.cont [14/16] 0.0, 128
        %367 = vxpose.xlu0.b32.cont [15/16] 0.0, 128
        %368 = vxpose.xlu0.b32.end [16/16] 0.0, 128
        %v369 = vpop.trf.xlu0
        %v370 = vpop.trf.xlu0
        %v371 = vpop.trf.xlu0
        %v372 = vpop.trf.xlu0
        %v373 = vpop.trf.xlu0
        %v374 = vpop.trf.xlu0
        %v375 = vpop.trf.xlu0
        %v376 = vpop.trf.xlu0
        %v377 = vpop.trf.xlu0
        %v378 = vpop.trf.xlu0
        %v379 = vpop.trf.xlu0
        %v380 = vpop.trf.xlu0
        %v381 = vpop.trf.xlu0
        %v382 = vpop.trf.xlu0
        %v383 = vpop.trf.xlu0
        %v384 = vpop.trf.xlu0
        %385 = vxpose.xlu0.b32.start [1/16] %v319, 128
        %386 = vxpose.xlu0.b32.cont [2/16] 0.0, 128
        %387 = vxpose.xlu0.b32.cont [3/16] 0.0, 128
        %388 = vxpose.xlu0.b32.cont [4/16] 0.0, 128
        %389 = vxpose.xlu0.b32.cont [5/16] 0.0, 128
        %390 = vxpose.xlu0.b32.cont [6/16] 0.0, 128
        %391 = vxpose.xlu0.b32.cont [7/16] 0.0, 128
        %392 = vxpose.xlu0.b32.cont [8/16] 0.0, 128
        %393 = vxpose.xlu0.b32.cont [9/16] 0.0, 128
        %394 = vxpose.xlu0.b32.cont [10/16] 0.0, 128
        %395 = vxpose.xlu0.b32.cont [11/16] 0.0, 128
        %396 = vxpose.xlu0.b32.cont [12/16] 0.0, 128
        %397 = vxpose.xlu0.b32.cont [13/16] 0.0, 128
        %398 = vxpose.xlu0.b32.cont [14/16] 0.0, 128
        %399 = vxpose.xlu0.b32.cont [15/16] 0.0, 128
        %400 = vxpose.xlu0.b32.end [16/16] 0.0, 128
        %v401 = vpop.trf.xlu0
        %v402 = vpop.trf.xlu0
        %v403 = vpop.trf.xlu0
        %v404 = vpop.trf.xlu0
        %v405 = vpop.trf.xlu0
        %v406 = vpop.trf.xlu0
        %v407 = vpop.trf.xlu0
        %v408 = vpop.trf.xlu0
        %v409 = vpop.trf.xlu0
        %v410 = vpop.trf.xlu0
        %v411 = vpop.trf.xlu0
        %v412 = vpop.trf.xlu0
        %v413 = vpop.trf.xlu0
        %v414 = vpop.trf.xlu0
        %v415 = vpop.trf.xlu0
        %v416 = vpop.trf.xlu0
        %417 = vxpose.xlu0.b32.start [1/16] %v320, 128
        %418 = vxpose.xlu0.b32.cont [2/16] 0.0, 128
        %419 = vxpose.xlu0.b32.cont [3/16] 0.0, 128
        %420 = vxpose.xlu0.b32.cont [4/16] 0.0, 128
        %421 = vxpose.xlu0.b32.cont [5/16] 0.0, 128
        %422 = vxpose.xlu0.b32.cont [6/16] 0.0, 128
        %423 = vxpose.xlu0.b32.cont [7/16] 0.0, 128
        %424 = vxpose.xlu0.b32.cont [8/16] 0.0, 128
        %425 = vxpose.xlu0.b32.cont [9/16] 0.0, 128
        %426 = vxpose.xlu0.b32.cont [10/16] 0.0, 128
        %427 = vxpose.xlu0.b32.cont [11/16] 0.0, 128
        %428 = vxpose.xlu0.b32.cont [12/16] 0.0, 128
        %429 = vxpose.xlu0.b32.cont [13/16] 0.0, 128
        %430 = vxpose.xlu0.b32.cont [14/16] 0.0, 128
        %431 = vxpose.xlu0.b32.cont [15/16] 0.0, 128
        %432 = vxpose.xlu0.b32.end [16/16] 0.0, 128
        %v433 = vpop.trf.xlu0
        %v434 = vpop.trf.xlu0
        %v435 = vpop.trf.xlu0
        %v436 = vpop.trf.xlu0
        %v437 = vpop.trf.xlu0
        %v438 = vpop.trf.xlu0
        %v439 = vpop.trf.xlu0
        %v440 = vpop.trf.xlu0
        %v441 = vpop.trf.xlu0
        %v442 = vpop.trf.xlu0
        %v443 = vpop.trf.xlu0
        %v444 = vpop.trf.xlu0
        %v445 = vpop.trf.xlu0
        %v446 = vpop.trf.xlu0
        %v447 = vpop.trf.xlu0
        %v448 = vpop.trf.xlu0
        %v449 = vld [vmem:[#allocation7] sm:$0xff]
        %vm450 = vcmask 64512
        %v452 = vsel %vm450, %v337, 0
        %v455 = vsel %vm450, %v369, 0
        %v458 = vsel %vm450, %v401, 0
        %v461 = vsel %vm450, %v433, 0
        %463 = vmatpush.msra.mxu0 0.0
        %464 = vmatpush.msra.mxu0 0.0
        %465 = vmatpush.msra.mxu0 0.0
        %466 = vmatpush.msra.mxu0 0.0
        %467 = vmatpush.msra.mxu0 0.0
        %468 = vmatpush.msra.mxu0 0.0
        %469 = vmatpush.msra.mxu0 0.0
        %470 = vmatpush.msra.mxu0 0.0
        %471 = vmatpush.msra.mxu0 0.0
        %472 = vmatpush.msra.mxu0 0.0
        %473 = vmatpush.msra.mxu0 0.0
        %474 = vmatpush.msra.mxu0 0.0
        %475 = vmatpush.msra.mxu0 0.0
        %476 = vmatpush.msra.mxu0 0.0
        %477 = vmatpush.msra.mxu0 0.0
        %478 = vmatpush.msra.mxu0 %v449
        %479 = vmatmul.f32.gmra.mxu0 %v452
        %v480 = vpop.f32.mrf.mxu0
        %v481 = vadd.f32 0.0, %v480
        %482 = vmatmul.f32.gmra.mxu0 %v455
        %v483 = vpop.f32.mrf.mxu0
        %v484 = vadd.f32 0.0, %v483
        %485 = vmatmul.f32.gmra.mxu0 %v458
        %v486 = vpop.f32.mrf.mxu0
        %v487 = vadd.f32 0.0, %v486
        %488 = vmatmul.f32.gmra.mxu0 %v461
        %v489 = vpop.f32.mrf.mxu0
        %v490 = vadd.f32 0.0, %v489
        %491 = vdwg.mxu0
        %492 = vxpose.xlu0.b32.start [1/16] %v481, 128
        %493 = vxpose.xlu0.b32.cont [2/16] 0.0, 128
        %494 = vxpose.xlu0.b32.cont [3/16] 0.0, 128
        %495 = vxpose.xlu0.b32.cont [4/16] 0.0, 128
        %496 = vxpose.xlu0.b32.cont [5/16] 0.0, 128
        %497 = vxpose.xlu0.b32.cont [6/16] 0.0, 128
        %498 = vxpose.xlu0.b32.cont [7/16] 0.0, 128
        %499 = vxpose.xlu0.b32.cont [8/16] 0.0, 128
        %500 = vxpose.xlu0.b32.cont [9/16] 0.0, 128
        %501 = vxpose.xlu0.b32.cont [10/16] 0.0, 128
        %502 = vxpose.xlu0.b32.cont [11/16] 0.0, 128
        %503 = vxpose.xlu0.b32.cont [12/16] 0.0, 128
        %504 = vxpose.xlu0.b32.cont [13/16] 0.0, 128
        %505 = vxpose.xlu0.b32.cont [14/16] 0.0, 128
        %506 = vxpose.xlu0.b32.cont [15/16] 0.0, 128
        %507 = vxpose.xlu0.b32.end [16/16] 0.0, 128
        %v508 = vpop.trf.xlu0
        %v509 = vpop.trf.xlu0
        %v510 = vpop.trf.xlu0
        %v511 = vpop.trf.xlu0
        %v512 = vpop.trf.xlu0
        %v513 = vpop.trf.xlu0
        %v514 = vpop.trf.xlu0
        %v515 = vpop.trf.xlu0
        %v516 = vpop.trf.xlu0
        %v517 = vpop.trf.xlu0
        %v518 = vpop.trf.xlu0
        %v519 = vpop.trf.xlu0
        %v520 = vpop.trf.xlu0
        %v521 = vpop.trf.xlu0
        %v522 = vpop.trf.xlu0
        %v523 = vpop.trf.xlu0
        %524 = vxpose.xlu0.b32.start [1/16] %v484, 128
        %525 = vxpose.xlu0.b32.cont [2/16] 0.0, 128
        %526 = vxpose.xlu0.b32.cont [3/16] 0.0, 128
        %527 = vxpose.xlu0.b32.cont [4/16] 0.0, 128
        %528 = vxpose.xlu0.b32.cont [5/16] 0.0, 128
        %529 = vxpose.xlu0.b32.cont [6/16] 0.0, 128
        %530 = vxpose.xlu0.b32.cont [7/16] 0.0, 128
        %531 = vxpose.xlu0.b32.cont [8/16] 0.0, 128
        %532 = vxpose.xlu0.b32.cont [9/16] 0.0, 128
        %533 = vxpose.xlu0.b32.cont [10/16] 0.0, 128
        %534 = vxpose.xlu0.b32.cont [11/16] 0.0, 128
        %535 = vxpose.xlu0.b32.cont [12/16] 0.0, 128
        %536 = vxpose.xlu0.b32.cont [13/16] 0.0, 128
        %537 = vxpose.xlu0.b32.cont [14/16] 0.0, 128
        %538 = vxpose.xlu0.b32.cont [15/16] 0.0, 128
        %539 = vxpose.xlu0.b32.end [16/16] 0.0, 128
        %v540 = vpop.trf.xlu0
        %v541 = vpop.trf.xlu0
        %v542 = vpop.trf.xlu0
        %v543 = vpop.trf.xlu0
        %v544 = vpop.trf.xlu0
        %v545 = vpop.trf.xlu0
        %v546 = vpop.trf.xlu0
        %v547 = vpop.trf.xlu0
        %v548 = vpop.trf.xlu0
        %v549 = vpop.trf.xlu0
        %v550 = vpop.trf.xlu0
        %v551 = vpop.trf.xlu0
        %v552 = vpop.trf.xlu0
        %v553 = vpop.trf.xlu0
        %v554 = vpop.trf.xlu0
        %v555 = vpop.trf.xlu0
        %556 = vxpose.xlu0.b32.start [1/16] %v487, 128
        %557 = vxpose.xlu0.b32.cont [2/16] 0.0, 128
        %558 = vxpose.xlu0.b32.cont [3/16] 0.0, 128
        %559 = vxpose.xlu0.b32.cont [4/16] 0.0, 128
        %560 = vxpose.xlu0.b32.cont [5/16] 0.0, 128
        %561 = vxpose.xlu0.b32.cont [6/16] 0.0, 128
        %562 = vxpose.xlu0.b32.cont [7/16] 0.0, 128
        %563 = vxpose.xlu0.b32.cont [8/16] 0.0, 128
        %564 = vxpose.xlu0.b32.cont [9/16] 0.0, 128
        %565 = vxpose.xlu0.b32.cont [10/16] 0.0, 128
        %566 = vxpose.xlu0.b32.cont [11/16] 0.0, 128
        %567 = vxpose.xlu0.b32.cont [12/16] 0.0, 128
        %568 = vxpose.xlu0.b32.cont [13/16] 0.0, 128
        %569 = vxpose.xlu0.b32.cont [14/16] 0.0, 128
        %570 = vxpose.xlu0.b32.cont [15/16] 0.0, 128
        %571 = vxpose.xlu0.b32.end [16/16] 0.0, 128
        %v572 = vpop.trf.xlu0
        %v573 = vpop.trf.xlu0
        %v574 = vpop.trf.xlu0
        %v575 = vpop.trf.xlu0
        %v576 = vpop.trf.xlu0
        %v577 = vpop.trf.xlu0
        %v578 = vpop.trf.xlu0
        %v579 = vpop.trf.xlu0
        %v580 = vpop.trf.xlu0
        %v581 = vpop.trf.xlu0
        %v582 = vpop.trf.xlu0
        %v583 = vpop.trf.xlu0
        %v584 = vpop.trf.xlu0
        %v585 = vpop.trf.xlu0
        %v586 = vpop.trf.xlu0
        %v587 = vpop.trf.xlu0
        %588 = vxpose.xlu0.b32.start [1/16] %v490, 128
        %589 = vxpose.xlu0.b32.cont [2/16] 0.0, 128
        %590 = vxpose.xlu0.b32.cont [3/16] 0.0, 128
        %591 = vxpose.xlu0.b32.cont [4/16] 0.0, 128
        %592 = vxpose.xlu0.b32.cont [5/16] 0.0, 128
        %593 = vxpose.xlu0.b32.cont [6/16] 0.0, 128
        %594 = vxpose.xlu0.b32.cont [7/16] 0.0, 128
        %595 = vxpose.xlu0.b32.cont [8/16] 0.0, 128
        %596 = vxpose.xlu0.b32.cont [9/16] 0.0, 128
        %597 = vxpose.xlu0.b32.cont [10/16] 0.0, 128
        %598 = vxpose.xlu0.b32.cont [11/16] 0.0, 128
        %599 = vxpose.xlu0.b32.cont [12/16] 0.0, 128
        %600 = vxpose.xlu0.b32.cont [13/16] 0.0, 128
        %601 = vxpose.xlu0.b32.cont [14/16] 0.0, 128
        %602 = vxpose.xlu0.b32.cont [15/16] 0.0, 128
        %603 = vxpose.xlu0.b32.end [16/16] 0.0, 128
        %v604 = vpop.trf.xlu0
        %v605 = vpop.trf.xlu0
        %v606 = vpop.trf.xlu0
        %v607 = vpop.trf.xlu0
        %v608 = vpop.trf.xlu0
        %v609 = vpop.trf.xlu0
        %v610 = vpop.trf.xlu0
        %v611 = vpop.trf.xlu0
        %v612 = vpop.trf.xlu0
        %v613 = vpop.trf.xlu0
        %v614 = vpop.trf.xlu0
        %v615 = vpop.trf.xlu0
        %v616 = vpop.trf.xlu0
        %v617 = vpop.trf.xlu0
        %v618 = vpop.trf.xlu0
        %v619 = vpop.trf.xlu0
        %v620 = vld [vmem:[#allocation8] sm:$0xff]
        %v622 = vsel %vm450, %v508, 0
        %v625 = vsel %vm450, %v509, 0
        %v628 = vsel %vm450, %v540, 0
        %v631 = vsel %vm450, %v541, 0
        %v634 = vsel %vm450, %v572, 0
        %v637 = vsel %vm450, %v573, 0
        %v640 = vsel %vm450, %v604, 0
        %v643 = vsel %vm450, %v605, 0
        %645 = vmatpush.msra.mxu0 0.0
        %646 = vmatpush.msra.mxu0 0.0
        %647 = vmatpush.msra.mxu0 0.0
        %648 = vmatpush.msra.mxu0 0.0
        %649 = vmatpush.msra.mxu0 0.0
        %650 = vmatpush.msra.mxu0 0.0
        %651 = vmatpush.msra.mxu0 0.0
        %652 = vmatpush.msra.mxu0 0.0
        %653 = vmatpush.msra.mxu0 0.0
        %654 = vmatpush.msra.mxu0 0.0
        %655 = vmatpush.msra.mxu0 0.0
        %656 = vmatpush.msra.mxu0 0.0
        %657 = vmatpush.msra.mxu0 0.0
        %658 = vmatpush.msra.mxu0 0.0
        %659 = vmatpush.msra.mxu0 0.0
        %660 = vmatpush.msra.mxu0 %v620
        %661 = vmatmul.f32.gmra.mxu0 %v622
        %v662 = vpop.f32.mrf.mxu0
        %v663 = vadd.f32 0.0, %v662
        %664 = vmatmul.f32.gmra.mxu0 %v625
        %v665 = vpop.f32.mrf.mxu0
        %v666 = vadd.f32 0.0, %v665
        %667 = vmatmul.f32.gmra.mxu0 %v628
        %v668 = vpop.f32.mrf.mxu0
        %v669 = vadd.f32 0.0, %v668
        %670 = vmatmul.f32.gmra.mxu0 %v631
        %v671 = vpop.f32.mrf.mxu0
        %v672 = vadd.f32 0.0, %v671
        %673 = vmatmul.f32.gmra.mxu0 %v634
        %v674 = vpop.f32.mrf.mxu0
        %v675 = vadd.f32 0.0, %v674
        %676 = vmatmul.f32.gmra.mxu0 %v637
        %v677 = vpop.f32.mrf.mxu0
        %v678 = vadd.f32 0.0, %v677
        %679 = vmatmul.f32.gmra.mxu0 %v640
        %v680 = vpop.f32.mrf.mxu0
        %v681 = vadd.f32 0.0, %v680
        %682 = vmatmul.f32.gmra.mxu0 %v643
        %v683 = vpop.f32.mrf.mxu0
        %v684 = vadd.f32 0.0, %v683
        %685 = vdwg.mxu0
        %v686 = vld [vmem:[%s267] sm:$0xff]
        %v687 = vld [vmem:[%s267 + $0x8] sm:$0xff]
        %v688 = vld [vmem:[%s267 + $0x10] sm:$0xff]
        %v689 = vld [vmem:[%s267 + $0x18] sm:$0xff]
        %v690 = vld [vmem:[%s267 + $0x20] sm:$0xff]
        %v691 = vld [vmem:[%s267 + $0x28] sm:$0xff]
        %v692 = vld [vmem:[%s267 + $0x30] sm:$0xff]
        %v693 = vld [vmem:[%s267 + $0x38] sm:$0xff]
        %v694 = vrcp.pop %v686
        %v695 = vmul.f32 %v686, %v694
        %v696 = vsub.f32 1.0, %v695
        %v697 = vmul.f32 %v694, %v696
        %v698 = vadd.f32 %v694, %v697
        %vm699 = vweird.f32 %v686
        %vm700 = vweird.f32 %v694
        %vm701 = vmor %vm699, %vm700
        %v702 = vsel %vm701, %v694, %v698
        %v703 = vand.u32 2147483647, %v686
        %vm704 = vcmp.eq.f32.partialorder %v703, 8.507059e+37
        %v705 = vand.u32 %v686, 2147483648
        %v706 = vor.u32 1.1754944e-38, %v705
        %v707 = vsel %vm704, %v706, %v702
        %v708 = vmul.f32 %v663, %v707
        %v709 = vrcp.pop %v687
        %v710 = vmul.f32 %v687, %v709
        %v711 = vsub.f32 1.0, %v710
        %v712 = vmul.f32 %v709, %v711
        %v713 = vadd.f32 %v709, %v712
        %vm714 = vweird.f32 %v687
        %vm715 = vweird.f32 %v709
        %vm716 = vmor %vm714, %vm715
        %v717 = vsel %vm716, %v709, %v713
        %v718 = vand.u32 2147483647, %v687
        %vm719 = vcmp.eq.f32.partialorder %v718, 8.507059e+37
        %v720 = vand.u32 %v687, 2147483648
        %v721 = vor.u32 1.1754944e-38, %v720
        %v722 = vsel %vm719, %v721, %v717
        %v723 = vmul.f32 %v666, %v722
        %v724 = vrcp.pop %v688
        %v725 = vmul.f32 %v688, %v724
        %v726 = vsub.f32 1.0, %v725
        %v727 = vmul.f32 %v724, %v726
        %v728 = vadd.f32 %v724, %v727
        %vm729 = vweird.f32 %v688
        %vm730 = vweird.f32 %v724
        %vm731 = vmor %vm729, %vm730
        %v732 = vsel %vm731, %v724, %v728
        %v733 = vand.u32 2147483647, %v688
        %vm734 = vcmp.eq.f32.partialorder %v733, 8.507059e+37
        %v735 = vand.u32 %v688, 2147483648
        %v736 = vor.u32 1.1754944e-38, %v735
        %v737 = vsel %vm734, %v736, %v732
        %v738 = vmul.f32 %v669, %v737
        %v739 = vrcp.pop %v689
        %v740 = vmul.f32 %v689, %v739
        %v741 = vsub.f32 1.0, %v740
        %v742 = vmul.f32 %v739, %v741
        %v743 = vadd.f32 %v739, %v742
        %vm744 = vweird.f32 %v689
        %vm745 = vweird.f32 %v739
        %vm746 = vmor %vm744, %vm745
        %v747 = vsel %vm746, %v739, %v743
        %v748 = vand.u32 2147483647, %v689
        %vm749 = vcmp.eq.f32.partialorder %v748, 8.507059e+37
        %v750 = vand.u32 %v689, 2147483648
        %v751 = vor.u32 1.1754944e-38, %v750
        %v752 = vsel %vm749, %v751, %v747
        %v753 = vmul.f32 %v672, %v752
        %v754 = vrcp.pop %v690
        %v755 = vmul.f32 %v690, %v754
        %v756 = vsub.f32 1.0, %v755
        %v757 = vmul.f32 %v754, %v756
        %v758 = vadd.f32 %v754, %v757
        %vm759 = vweird.f32 %v690
        %vm760 = vweird.f32 %v754
        %vm761 = vmor %vm759, %vm760
        %v762 = vsel %vm761, %v754, %v758
        %v763 = vand.u32 2147483647, %v690
        %vm764 = vcmp.eq.f32.partialorder %v763, 8.507059e+37
        %v765 = vand.u32 %v690, 2147483648
        %v766 = vor.u32 1.1754944e-38, %v765
        %v767 = vsel %vm764, %v766, %v762
        %v768 = vmul.f32 %v675, %v767
        %v769 = vrcp.pop %v691
        %v770 = vmul.f32 %v691, %v769
        %v771 = vsub.f32 1.0, %v770
        %v772 = vmul.f32 %v769, %v771
        %v773 = vadd.f32 %v769, %v772
        %vm774 = vweird.f32 %v691
        %vm775 = vweird.f32 %v769
        %vm776 = vmor %vm774, %vm775
        %v777 = vsel %vm776, %v769, %v773
        %v778 = vand.u32 2147483647, %v691
        %vm779 = vcmp.eq.f32.partialorder %v778, 8.507059e+37
        %v780 = vand.u32 %v691, 2147483648
        %v781 = vor.u32 1.1754944e-38, %v780
        %v782 = vsel %vm779, %v781, %v777
        %v783 = vmul.f32 %v678, %v782
        %v784 = vrcp.pop %v692
        %v785 = vmul.f32 %v692, %v784
        %v786 = vsub.f32 1.0, %v785
        %v787 = vmul.f32 %v784, %v786
        %v788 = vadd.f32 %v784, %v787
        %vm789 = vweird.f32 %v692
        %vm790 = vweird.f32 %v784
        %vm791 = vmor %vm789, %vm790
        %v792 = vsel %vm791, %v784, %v788
        %v793 = vand.u32 2147483647, %v692
        %vm794 = vcmp.eq.f32.partialorder %v793, 8.507059e+37
        %v795 = vand.u32 %v692, 2147483648
        %v796 = vor.u32 1.1754944e-38, %v795
        %v797 = vsel %vm794, %v796, %v792
        %v798 = vmul.f32 %v681, %v797
        %v799 = vrcp.pop %v693
        %v800 = vmul.f32 %v693, %v799
        %v801 = vsub.f32 1.0, %v800
        %v802 = vmul.f32 %v799, %v801
        %v803 = vadd.f32 %v799, %v802
        %vm804 = vweird.f32 %v693
        %vm805 = vweird.f32 %v799
        %vm806 = vmor %vm804, %vm805
        %v807 = vsel %vm806, %v799, %v803
        %v808 = vand.u32 2147483647, %v693
        %vm809 = vcmp.eq.f32.partialorder %v808, 8.507059e+37
        %v810 = vand.u32 %v693, 2147483648
        %v811 = vor.u32 1.1754944e-38, %v810
        %v812 = vsel %vm809, %v811, %v807
        %v813 = vmul.f32 %v684, %v812
        %v814 = vlog2.pop %v708
        %v815 = vmul.f32 %v814, 0.6931472
        %v816 = vlog2.pop %v723
        %v817 = vmul.f32 %v816, 0.6931472
        %v818 = vlog2.pop %v738
        %v819 = vmul.f32 %v818, 0.6931472
        %v820 = vlog2.pop %v753
        %v821 = vmul.f32 %v820, 0.6931472
        %v822 = vlog2.pop %v768
        %v823 = vmul.f32 %v822, 0.6931472
        %v824 = vlog2.pop %v783
        %v825 = vmul.f32 %v824, 0.6931472
        %v826 = vlog2.pop %v798
        %v827 = vmul.f32 %v826, 0.6931472
        %v828 = vlog2.pop %v813
        %v829 = vmul.f32 %v828, 0.6931472
        %v830 = vld [vmem:[%s307] sm:$0xff]
        %vm831 = vcmask 130048
        %v832 = vsel %vm831, %v815, 0.0
        %v833 = vsel %vm831, %v817, 0.0
        %v834 = vadd.f32 %v832, %v833
        %v835 = vsel %vm831, %v819, 0.0
        %v836 = vadd.f32 %v834, %v835
        %v837 = vsel %vm831, %v821, 0.0
        %v838 = vadd.f32 %v836, %v837
        %v839 = vsel %vm831, %v823, 0.0
        %v840 = vadd.f32 %v838, %v839
        %v841 = vsel %vm831, %v825, 0.0
        %v842 = vadd.f32 %v840, %v841
        %v843 = vsel %vm831, %v827, 0.0
        %v844 = vadd.f32 %v842, %v843
        %v845 = vsel %vm831, %v829, 0.0
        %v846 = vadd.f32 %v844, %v845
        %v847 = vrot.slane %v846, 4
        %v848 = vadd.f32 %v846, %v847
        %v849 = vrot.slane %v848, 2
        %v850 = vadd.f32 %v848, %v849
        %v851 = vrot.slane %v850, 1
        %v852 = vadd.f32 %v850, %v851
        %v853 = vmul.f32 %v815, %v815
        %v854 = vmul.f32 %v817, %v817
        %v855 = vmul.f32 %v819, %v819
        %v856 = vmul.f32 %v821, %v821
        %v857 = vmul.f32 %v823, %v823
        %v858 = vmul.f32 %v825, %v825
        %v859 = vmul.f32 %v827, %v827
        %v860 = vmul.f32 %v829, %v829
        %v861 = vsel %vm831, %v853, 0.0
        %v862 = vsel %vm831, %v854, 0.0
        %v863 = vadd.f32 %v861, %v862
        %v864 = vsel %vm831, %v855, 0.0
        %v865 = vadd.f32 %v863, %v864
        %v866 = vsel %vm831, %v856, 0.0
        %v867 = vadd.f32 %v865, %v866
        %v868 = vsel %vm831, %v857, 0.0
        %v869 = vadd.f32 %v867, %v868
        %v870 = vsel %vm831, %v858, 0.0
        %v871 = vadd.f32 %v869, %v870
        %v872 = vsel %vm831, %v859, 0.0
        %v873 = vadd.f32 %v871, %v872
        %v874 = vsel %vm831, %v860, 0.0
        %v875 = vadd.f32 %v873, %v874
        %v876 = vrot.slane %v875, 4
        %v877 = vadd.f32 %v875, %v876
        %v878 = vrot.slane %v877, 2
        %v879 = vadd.f32 %v877, %v878
        %v880 = vrot.slane %v879, 1
        %v881 = vadd.f32 %v879, %v880
        %vm882 = vcmask 1040384
        %v883 = vsel %vm882, %v852, %v881
        %v884 = vsel %vm831, %v883, 0.0
        %vm885 = vcmask 1041408
        %v886 = vsel %vm885, %v884, 0.0
        %v887 = vadd.f32 %v830, %v886
        %888 = vst [vmem:[%s307] sm:$0xff] %v887
        %s889 = sand.u32 %s143, 1
        %s890 = scalar_lea.sflag [#allocation4], %s889
        %s891 = sand.u32 %s143, 1
        %s892 = smul.addr %s891, 8
        %s893 = scalar_lea.vmem [#allocation10], %s892
        // Predicated region
        $region57: #{tpu_custom_call.1} parent=35 // pred_check
          %p894 = pneg %p153
        $region58: #{tpu_custom_call.1} parent=35 // pred_check_branch
          %896 = sbr.rel (%p894) target = $region60
        $region59: #{tpu_custom_call.1} parent=35 // pred_region
          %898 = vsyncadd %s890, 0
          %s899 = smul.addr %s29, 8
          %s900 = scalar_lea.hbm %s4, %s899
          %s902 = sshll.u32 %s893, 4
          %s903 = int_to_ptr.vmem [resolvable:$true] %s902
          %s904 = sshll.u32 %s900, 4
          %s905 = int_to_ptr.hbm [resolvable:$true] %s904
          %907 = dma.vmem_to_hbm [thread:$0]  %s903, 128, %s905, %s890
        $region60: #{tpu_custom_call.1} parent=35 // pred_fallthru
          _
      $region36: #{tpu_custom_call.1} parent=5 // pred_fallthru
        _
      %p908 = scmp.le.s32.totalorder 2, %s20
      // Predicated region
      $region61: #{tpu_custom_call.1} parent=5 // pred_check
        %p909 = pneg %p908
      $region62: #{tpu_custom_call.1} parent=5 // pred_check_branch
        %911 = sbr.rel (%p909) target = $region64
      $region63: #{tpu_custom_call.1} parent=5 // pred_region
        %s912 = ssub.s32 %s20, 2
        // Predicated region
        $region65: #{tpu_custom_call.1} parent=63 // pred_check
          %p913 = pneg %p159
        $region66: #{tpu_custom_call.1} parent=63 // pred_check_branch
          %915 = sbr.rel (%p913) target = $region68
        $region67: #{tpu_custom_call.1} parent=63 // pred_region
          %s916 = sand.u32 %s144, 1
          %s917 = scalar_lea.sflag [#allocation4], %s916
          %s918 = sand.u32 %s144, 1
          %s919 = smul.addr %s918, 8
          %s920 = scalar_lea.vmem [#allocation10], %s919
          %922 = dma.done %s917, 128
        $region68: #{tpu_custom_call.1} parent=63 // pred_fallthru
          _
      $region64: #{tpu_custom_call.1} parent=5 // pred_fallthru
        _
    $region6: #{tpu_custom_call.1} parent=1 // loop_footer
      %s24 = sadd.s32 1, %s20
    $region7: #{tpu_custom_call.1} parent=1 // loop_footer_branch
      %19 = sbr.rel target = $region3
    $region8: #{tpu_custom_call.1} parent=1 // loop_exit
      _
    %923 = vsyncpa [#allocation3], 1
    %s924 = scalar_lea.sflag [#allocation3], 1
    %925 = vsyncpa %s924, 1
    %926 = vsyncpa [#allocation6], 1
    %s927 = scalar_lea.sflag [#allocation6], 1
    %928 = vsyncpa %s927, 1
    %929 = vsyncpa [#allocation9], 1
    %930 = vsyncpa [#allocation4], 1
    %s931 = scalar_lea.sflag [#allocation4], 1
    %932 = vsyncpa %s931, 1

</llo_original>
